<compile_context>
chip_gen: v7x
topology: tpu7x:2x2x1
jax: 0.10.0
libtpu: 0.0.40
codegen_flags: <defaults>
</compile_context>

<pallas_src>
import jax
import jax.numpy as jnp
from jax.experimental import pallas as pl
from jax.experimental.pallas import tpu as pltpu


# ---------------------------------------------------------------------------
# Kernels
# ---------------------------------------------------------------------------

def _rowstats_kernel(x_ref, shift_ref, sum_ref, ssq_ref):
    """Per-row (b,c) sum / sum-of-squares of (x - shift), accumulated over the
    spatial grid axis.

    x_ref:     [t_r, t_hw] tile of the [B*C, H*W] view
    shift_ref: [t_r, 1]    per-row shift (stored_mean[c]) for stable variance
    sum_ref:   [t_r, 1]    resident accumulator (same block for every t)
    ssq_ref:   [t_r, 1]    resident accumulator
    """
    @pl.when(pl.program_id(1) == 0)
    def _init():
        sum_ref[...] = jnp.zeros_like(sum_ref)
        ssq_ref[...] = jnp.zeros_like(ssq_ref)

    xc = x_ref[...].astype(jnp.float32) - shift_ref[...]
    sum_ref[...] += jnp.sum(xc, axis=1, keepdims=True)
    ssq_ref[...] += jnp.sum(xc * xc, axis=1, keepdims=True)


def _normalize_kernel(x_ref, scale_ref, shift_ref, o_ref):
    """Streaming elementwise pass: out = x * scale + shift (row-broadcast).

    Math in f32 (free: the pass is HBM-bound); cast only at the final store.
    """
    x = x_ref[...].astype(jnp.float32)
    o_ref[...] = (x * scale_ref[...] + shift_ref[...]).astype(o_ref.dtype)


# ---------------------------------------------------------------------------
# Sizing helpers
# ---------------------------------------------------------------------------

def _round_up(n, m):
    return ((n + m - 1) // m) * m


def _sublane_align(dtype):
    # 8 sublanes of 32-bit; sub-32-bit dtypes pack along sublanes.
    return max(8, 32 // jnp.dtype(dtype).itemsize)


def _vmem_budget_bytes():
    """Generation-aware scoped-VMEM budget (conservative fallback)."""
    try:
        cap = int(pltpu.get_tpu_info().vmem_capacity_bytes)
    except Exception:
        cap = 64 << 20        # assume the tightest (v7x-class) part
    if cap <= (64 << 20):     # v7x: 64 MiB per TC -> leave real headroom
        return 40 << 20
    return 96 << 20           # v5e / v6e: 128 MiB per TC


def _choose_tile(n, align, max_tile):
    """Return (tile, n_padded): tile is a multiple of `align`, at most
    max(max_tile, align), divides n_padded, and n_padded >= n with bounded
    padding (never a masked / partial edge tile)."""
    max_tile = max((max_tile // align) * align, align)
    n_al = _round_up(n, align)
    if n_al <= max_tile:
        return n_al, n_al
    # Prefer a reasonably-large divisor of the aligned extent (zero padding).
    best = align
    t = max_tile
    while t >= align:
        if n_al % t == 0:
            best = t
            break
        t -= align
    if 2 * best >= max_tile:
        return best, n_al
    # Otherwise: full-cap tiles with one zero-padded edge (waste < one tile).
    return max_tile, _round_up(n, max_tile)


# ---------------------------------------------------------------------------
# Wrapper
# ---------------------------------------------------------------------------

def cond_batch_norm_2d(x, y, w_gain, b_gain, w_bias, b_bias,
                       stored_mean, stored_var, *, eps=1e-5, training=True,
                       donate_x=False):
    """x: [B, C, H, W] (NCHW), y: [B, in_features]. Returns [B, C, H, W]."""
    B, C, H, W = x.shape
    HW = H * W
    BC = B * C
    itemsize = jnp.dtype(x.dtype).itemsize
    align_r = _sublane_align(x.dtype)
    f32 = jnp.float32

    # ---- generation-aware tile / VMEM sizing --------------------------------
    budget = _vmem_budget_bytes()
    # pass 2 double-buffers x-in + out (~4 live tiles); pass 1 only x-in (~2).
    tile_cap_norm = min((budget - (8 << 20)) // 4, 16 << 20)
    tile_cap_stats = min(2 * tile_cap_norm, (budget - (8 << 20)) // 2)

    t_r, BC_pad = _choose_tile(BC, align_r, 512)
    max_thw = max(128, (tile_cap_norm // (t_r * itemsize)) // 128 * 128)
    t_hw, HW_pad = _choose_tile(HW, 128, max_thw)

    nr = BC_pad // t_r
    nt = HW_pad // t_hw
    # Keep >= 2 grid steps on a parallel axis when there is real work so the
    # megacore (2 TCs on v7x) and the DMA/compute pipeline have something to do.
    if nr == 1 and nt == 1 and BC_pad * HW_pad * itemsize >= (4 << 20):
        if t_hw % 256 == 0:
            t_hw //= 2
        elif t_r % (2 * align_r) == 0:
            t_r //= 2
        nr = BC_pad // t_r
        nt = HW_pad // t_hw

    # Stats pass can take a ~2x larger spatial tile under the same VMEM budget.
    t_hw_s = t_hw
    if HW_pad % (2 * t_hw) == 0 and t_r * (2 * t_hw) * itemsize <= tile_cap_stats:
        t_hw_s = 2 * t_hw
    nt_s = HW_pad // t_hw_s

    vmem_limit = int(budget)

    # ---- lane/sublane padding (zero cost when shapes already divide) --------
    x2 = x.reshape(BC, HW)
    pad_r = BC_pad - BC
    pad_hw = HW_pad - HW
    if pad_r or pad_hw:
        x2 = jnp.pad(x2, ((0, pad_r), (0, pad_hw)))

    stored_mean32 = stored_mean.astype(f32)
    stored_var32 = stored_var.astype(f32)

    # ---- pass 1 (training only): per-row shifted sum / sumsq ----------------
    if training:
        shift_rows = jnp.broadcast_to(stored_mean32[None, :], (B, C)).reshape(BC)
        shift_col = jnp.pad(shift_rows, (0, pad_r)).reshape(BC_pad, 1)

        stats_cost = pl.CostEstimate(
            flops=4 * BC_pad * HW_pad,
            transcendentals=0,
            bytes_accessed=BC_pad * HW_pad * itemsize + 3 * BC_pad * 4)

        raw_sum, raw_ssq = pl.pallas_call(
            _rowstats_kernel,
            out_shape=(jax.ShapeDtypeStruct((BC_pad, 1), f32),
                       jax.ShapeDtypeStruct((BC_pad, 1), f32)),
            grid=(nr, nt_s),
            in_specs=[pl.BlockSpec((t_r, t_hw_s), lambda r, t: (r, t)),
                      pl.BlockSpec((t_r, 1), lambda r, t: (r, 0))],
            out_specs=(pl.BlockSpec((t_r, 1), lambda r, t: (r, 0)),
                       pl.BlockSpec((t_r, 1), lambda r, t: (r, 0))),
            compiler_params=pltpu.CompilerParams(
                dimension_semantics=("parallel", "arbitrary"),
                vmem_limit_bytes=vmem_limit),
            cost_estimate=stats_cost,
        )(x2, shift_col)

        # Padded spatial columns contributed (0 - shift) each; correct for that,
        # then fold per-row partials to per-channel biased mean/var (tiny).
        row_sum = raw_sum[:BC, 0] + pad_hw * shift_rows
        row_ssq = raw_ssq[:BC, 0] - pad_hw * (shift_rows * shift_rows)
        n_elems = float(B * HW)
        ch_sum = row_sum.reshape(B, C).sum(axis=0) / n_elems    # E[x - m]
        ch_ssq = row_ssq.reshape(B, C).sum(axis=0) / n_elems    # E[(x - m)^2]
        mean = stored_mean32 + ch_sum
        var = jnp.maximum(ch_ssq - ch_sum * ch_sum, 0.0)        # biased, shift-stable
        # TODO(synk): running stored_mean/stored_var momentum update (PyTorch
        # uses the *unbiased* variance for it) is a training-time buffer side
        # effect that does not change this forward output; expose it to the
        # caller if stateful buffers are needed.
    else:
        mean = stored_mean32
        var = stored_var32

    # ---- class-conditional affine + BN fold (tiny; plain jnp, no launch) ----
    y32 = y.astype(f32)
    gain = 1.0 + y32 @ w_gain.astype(f32) + b_gain.astype(f32)[None, :]   # [B, C]
    bias = y32 @ w_bias.astype(f32) + b_bias.astype(f32)[None, :]         # [B, C]
    inv = jax.lax.rsqrt(var + eps)                                        # [C]
    scale = gain * inv[None, :]                                           # [B, C]
    shift = bias - mean[None, :] * scale                                  # [B, C]
    scale_col = jnp.pad(scale.reshape(BC), (0, pad_r)).reshape(BC_pad, 1)
    shift_col = jnp.pad(shift.reshape(BC), (0, pad_r)).reshape(BC_pad, 1)

    # ---- pass 2: pipelined streaming normalize ------------------------------
    norm_cost = pl.CostEstimate(
        flops=2 * BC_pad * HW_pad,
        transcendentals=0,
        bytes_accessed=2 * BC_pad * HW_pad * itemsize + 2 * BC_pad * 4)

    out2 = pl.pallas_call(
        _normalize_kernel,
        out_shape=jax.ShapeDtypeStruct((BC_pad, HW_pad), x.dtype),
        grid=(nr, nt),
        in_specs=[pl.BlockSpec((t_r, t_hw), lambda r, t: (r, t)),
                  pl.BlockSpec((t_r, 1), lambda r, t: (r, 0)),
                  pl.BlockSpec((t_r, 1), lambda r, t: (r, 0))],
        out_specs=pl.BlockSpec((t_r, t_hw), lambda r, t: (r, t)),
        compiler_params=pltpu.CompilerParams(
            dimension_semantics=("parallel", "parallel"),
            vmem_limit_bytes=vmem_limit),
        cost_estimate=norm_cost,
        # Reuse x's HBM buffer for the output when the caller can donate it
        # (halves peak HBM footprint for large activations).
        input_output_aliases=({0: 0} if donate_x else {}),
    )(x2, scale_col, shift_col)

    if pad_r or pad_hw:
        out2 = out2[:BC, :HW]
    return out2.reshape(B, C, H, W)


# ---------------------------------------------------------------------------
# Reference + test
# ---------------------------------------------------------------------------

def _reference(x, y, w_gain, b_gain, w_bias, b_bias,
               stored_mean, stored_var, eps, training):
    gain = 1.0 + y @ w_gain + b_gain          # [B, C]
    bias = y @ w_bias + b_bias                # [B, C]
    if training:
        mean = jnp.mean(x, axis=(0, 2, 3))
        var = jnp.mean((x - mean[None, :, None, None]) ** 2, axis=(0, 2, 3))
    else:
        mean, var = stored_mean, stored_var
    inv = jax.lax.rsqrt(var + eps)
    x_hat = (x - mean[None, :, None, None]) * inv[None, :, None, None]
    return x_hat * gain[:, :, None, None] + bias[:, :, None, None]


if __name__ == "__main__":
    B, C_out, F_in, H, W = 2, 4, 8, 16, 16   # batch, out_features, in_features, spatial
    eps = 1e-5

    key = jax.random.PRNGKey(0)
    kx, ky, kwg, kbg, kwb, kbb = jax.random.split(key, 6)

    x = jax.random.normal(kx, (B, C_out, H, W), dtype=jnp.float32)
    y = jax.random.normal(ky, (B, F_in), dtype=jnp.float32)

    # torch Linear weight is [out, in]; store the transposed [in, out] so the
    # wrapper computes y @ W.
    w_gain = 0.02 * jax.random.normal(kwg, (F_in, C_out), dtype=jnp.float32)
    b_gain = 0.01 * jax.random.normal(kbg, (C_out,), dtype=jnp.float32)
    w_bias = 0.02 * jax.random.normal(kwb, (F_in, C_out), dtype=jnp.float32)
    b_bias = 0.01 * jax.random.normal(kbb, (C_out,), dtype=jnp.float32)

    # register_buffer defaults: stored_mean = 0, stored_var = 1.
    stored_mean = jnp.zeros((C_out,), dtype=jnp.float32)
    stored_var = jnp.ones((C_out,), dtype=jnp.float32)

    # training mode (batch statistics)
    out_tr = cond_batch_norm_2d(x, y, w_gain, b_gain, w_bias, b_bias,
                                stored_mean, stored_var, eps=eps, training=True)
    out_tr = jax.block_until_ready(out_tr)
    ref_tr = _reference(x, y, w_gain, b_gain, w_bias, b_bias,
                        stored_mean, stored_var, eps, training=True)
    assert out_tr.shape == (B, C_out, H, W)
    assert jnp.allclose(out_tr, ref_tr, atol=1e-4, rtol=1e-4)

    # eval mode (stored statistics)
    out_ev = cond_batch_norm_2d(x, y, w_gain, b_gain, w_bias, b_bias,
                                stored_mean, stored_var, eps=eps, training=False)
    out_ev = jax.block_until_ready(out_ev)
    ref_ev = _reference(x, y, w_gain, b_gain, w_bias, b_bias,
                        stored_mean, stored_var, eps, training=False)
    assert jnp.allclose(out_ev, ref_ev, atol=1e-4, rtol=1e-4)

    print("KERNEL_OK")
</pallas_src>

<mosaic_0001>
module attributes {stable_mosaic.version = 11 : i64} {
  func.func @_rowstats_kernel(%arg0: i32, %arg1: i32, %arg2: memref<8x256xf32, #tpu.memory_space<vmem>>, %arg3: memref<8x1xf32, #tpu.memory_space<vmem>>, %arg4: memref<8x1xf32, #tpu.memory_space<vmem>>, %arg5: memref<8x1xf32, #tpu.memory_space<vmem>>) attributes {dimension_semantics = [#tpu.dimension_semantics<parallel>, #tpu.dimension_semantics<arbitrary>], iteration_bounds = array<i64: 1, 1>, scalar_prefetch = 0 : i64, scratch_operands = 0 : i64, tpu.core_type = #tpu.core_type<tc>, window_params = [{transform_indices = @transform_0, window_bounds = array<i64: 8, 256>}, {transform_indices = @transform_1, window_bounds = array<i64: 8, 1>}, {transform_indices = @transform_2, window_bounds = array<i64: 8, 1>}, {transform_indices = @transform_3, window_bounds = array<i64: 8, 1>}]} {
    %c0_i32 = arith.constant 0 : i32
    %0 = arith.cmpi eq, %arg1, %c0_i32 : i32
    %1 = arith.extui %0 : i1 to i32
    %c0_i32_0 = arith.constant 0 : i32
    %2 = arith.cmpi ne, %1, %c0_i32_0 : i32
    scf.if %2 {
      %cst_13 = arith.constant 0.000000e+00 : f32
      %18 = vector.broadcast %cst_13 : f32 to vector<8x1xf32>
      %c0_14 = arith.constant 0 : index
      %c0_15 = arith.constant 0 : index
      %19 = vector.load %arg4[%c0_14, %c0_15] : memref<8x1xf32, #tpu.memory_space<vmem>>, vector<8x1xf32>
      tpu.vector_store %arg4[%c0_14, %c0_15], %18 {strides = array<i32>} : memref<8x1xf32, #tpu.memory_space<vmem>>, vector<8x1xf32>,
      %cst_16 = arith.constant 0.000000e+00 : f32
      %20 = vector.broadcast %cst_16 : f32 to vector<8x1xf32>
      %c0_17 = arith.constant 0 : index
      %c0_18 = arith.constant 0 : index
      %21 = vector.load %arg5[%c0_17, %c0_18] : memref<8x1xf32, #tpu.memory_space<vmem>>, vector<8x1xf32>
      tpu.vector_store %arg5[%c0_17, %c0_18], %20 {strides = array<i32>} : memref<8x1xf32, #tpu.memory_space<vmem>>, vector<8x1xf32>,
    } else {
    }
    %c0 = arith.constant 0 : index
    %c0_1 = arith.constant 0 : index
    %3 = vector.load %arg2[%c0, %c0_1] : memref<8x256xf32, #tpu.memory_space<vmem>>, vector<8x256xf32>
    %c0_2 = arith.constant 0 : index
    %c0_3 = arith.constant 0 : index
    %4 = vector.load %arg3[%c0_2, %c0_3] : memref<8x1xf32, #tpu.memory_space<vmem>>, vector<8x1xf32>
    %5 = vector.broadcast %4 : vector<8x1xf32> to vector<8x256xf32>
    %6 = arith.subf %3, %5 : vector<8x256xf32>
    %c0_4 = arith.constant 0 : index
    %c0_5 = arith.constant 0 : index
    %7 = vector.load %arg4[%c0_4, %c0_5] : memref<8x1xf32, #tpu.memory_space<vmem>>, vector<8x1xf32>
    %cst = arith.constant dense<0.000000e+00> : vector<8xf32>
    %8 = vector.multi_reduction <add>, %6, %cst [1] : vector<8x256xf32> to vector<8xf32>
    %9 = vector.shape_cast %8 : vector<8xf32> to vector<8x1xf32>
    %10 = arith.addf %7, %9 : vector<8x1xf32>
    %c0_6 = arith.constant 0 : index
    %c0_7 = arith.constant 0 : index
    %11 = vector.load %arg4[%c0_6, %c0_7] : memref<8x1xf32, #tpu.memory_space<vmem>>, vector<8x1xf32>
    tpu.vector_store %arg4[%c0_6, %c0_7], %10 {strides = array<i32>} : memref<8x1xf32, #tpu.memory_space<vmem>>, vector<8x1xf32>,
    %c0_8 = arith.constant 0 : index
    %c0_9 = arith.constant 0 : index
    %12 = vector.load %arg5[%c0_8, %c0_9] : memref<8x1xf32, #tpu.memory_space<vmem>>, vector<8x1xf32>
    %13 = arith.mulf %6, %6 : vector<8x256xf32>
    %cst_10 = arith.constant dense<0.000000e+00> : vector<8xf32>
    %14 = vector.multi_reduction <add>, %13, %cst_10 [1] : vector<8x256xf32> to vector<8xf32>
    %15 = vector.shape_cast %14 : vector<8xf32> to vector<8x1xf32>
    %16 = arith.addf %12, %15 : vector<8x1xf32>
    %c0_11 = arith.constant 0 : index
    %c0_12 = arith.constant 0 : index
    %17 = vector.load %arg5[%c0_11, %c0_12] : memref<8x1xf32, #tpu.memory_space<vmem>>, vector<8x1xf32>
    tpu.vector_store %arg5[%c0_11, %c0_12], %16 {strides = array<i32>} : memref<8x1xf32, #tpu.memory_space<vmem>>, vector<8x1xf32>,
    return
  }
  func.func @transform_0(%arg0: i32, %arg1: i32) -> (i32, i32) {
    %c0_i32 = arith.constant 0 : i32
    return %arg0, %arg1 : i32, i32
  }
  func.func @transform_1(%arg0: i32, %arg1: i32) -> (i32, i32) {
    %c0_i32 = arith.constant 0 : i32
    %c0_i32_0 = arith.constant 0 : i32
    return %arg0, %c0_i32 : i32, i32
  }
  func.func @transform_2(%arg0: i32, %arg1: i32) -> (i32, i32) {
    %c0_i32 = arith.constant 0 : i32
    %c0_i32_0 = arith.constant 0 : i32
    return %arg0, %c0_i32 : i32, i32
  }
  func.func @transform_3(%arg0: i32, %arg1: i32) -> (i32, i32) {
    %c0_i32 = arith.constant 0 : i32
    %c0_i32_0 = arith.constant 0 : i32
    return %arg0, %c0_i32 : i32, i32
  }
}

</mosaic_0001>

<llo_original>
// kernel: tpu_custom_call.1
$region0: #{tpu_custom_call.1}
  #allocation0 [shape = 'u32[]', space=smem, size = 0x4, offset = 0x4, fixed_abs, tag = 'smem constant byte address 0x4 - core index']
  #allocation1 [shape = 'u32[144,128]{1,0:T(1,128)}', space=vmem, size = 0x12000, scoped, tag = 'internal scratch']
  %s0 = inlined_call_operand.hbm [shape: f32[8,256], index: 0, kind: input, shape index: {}]
  %s1 = inlined_call_operand.vmem [shape: f32[8,1], index: 1, kind: input, shape index: {}]
  %s2 = inlined_call_operand.vmem [shape: f32[8,1], index: 2, kind: output, shape index: {0}]
  %s3 = inlined_call_operand.vmem [shape: f32[8,1], index: 3, kind: output, shape index: {1}]
  %4 = xla_tuple %s2, %s3
  %s5 = sld [smem:[#allocation0]]
  $region34: #{tpu_custom_call.1} parent=0
    _
  %s7 = ssub.s32 1, %s5
  %s8 = scalar_select 0, %s7, %s5
  $region1: #{tpu_custom_call.1} parent=0
    #allocation2 [shape = 'u8[8192]{0}', space=vmem, size = 0x2000, scoped, tag = 'input window, operand 0, single buffered']
    #allocation3 [shape = 's32[1]{0}', space=sflag, size = 0x4, scoped, tag = 'scoped memory for tpu_custom_call.1']
    %9 = vsyncpa [#allocation3], 0
    // Predicated region
    $region2: #{tpu_custom_call.1} parent=1 // pred_check
      _
    $region3: #{tpu_custom_call.1} parent=1 // pred_check_branch
      %11 = sbr.rel (0) target = $region5
    $region4: #{tpu_custom_call.1} parent=1 // pred_region
      %s13 = ssub.s32 256, 256
      %14 = vsyncadd [#allocation3], %s13
      %s16 = sshll.u32 [#allocation2], 4
      %s17 = int_to_ptr.vmem [resolvable:$true] %s16
      %19 = dma.hbm_to_vmem [thread:$0]  %s0, 256, %s17, [#allocation3]
    $region5: #{tpu_custom_call.1} parent=1 // pred_fallthru
      _
    // Predicated region
    $region6: #{tpu_custom_call.1} parent=1 // pred_check
      _
    $region7: #{tpu_custom_call.1} parent=1 // pred_check_branch
      %21 = sbr.rel (0) target = $region9
    $region8: #{tpu_custom_call.1} parent=1 // pred_region
      _
    $region9: #{tpu_custom_call.1} parent=1 // pred_fallthru
      _
    // Predicated region
    $region10: #{tpu_custom_call.1} parent=1 // pred_check
      _
    $region11: #{tpu_custom_call.1} parent=1 // pred_check_branch
      %23 = sbr.rel (0) target = $region13
    $region12: #{tpu_custom_call.1} parent=1 // pred_region
      %24 = dma.done [#allocation3], 256
    $region13: #{tpu_custom_call.1} parent=1 // pred_fallthru
      _
    %p25 = scmp.eq.s32.totalorder 0, 0
    // Predicated region
    $region14: #{tpu_custom_call.1} parent=1 // pred_check
      %p26 = pneg %p25
    $region15: #{tpu_custom_call.1} parent=1 // pred_check_branch
      %28 = sbr.rel (%p26) target = $region17
    $region16: #{tpu_custom_call.1} parent=1 // pred_region
      %vm29 = vcmask 7168
      %30 = vst.msk [vmem:[%s2] sm:$0xff] %vm29, 0.0
      %31 = vst.msk [vmem:[%s3] sm:$0xff] %vm29, 0.0
    $region17: #{tpu_custom_call.1} parent=1 // pred_fallthru
      _
    %v32 = vld [vmem:[#allocation2] sm:$0xff]
    %v33 = vld [vmem:[#allocation2 + $0x8] sm:$0xff]
    %v34 = vld [vmem:[%s1] sm:$0xff]
    %36 = vset.pattern.permute.xlu0 0
    %37 = vperm.xlu0 %36, %v34
    %v38 = vpop.permute.xlu0 %37
    %v40 = vsub.f32 %v32, %v38
    %v41 = vsub.f32 %v33, %v38
    %v42 = vld [vmem:[%s2] sm:$0xff]
    %v43 = vadd.f32 %v40, %v41
    %44 = vadd.xlane.f32.xlu0 %v43
    %v45 = vpop.xlane.xlu0 %44
    %v46 = vadd.f32 %v42, %v45
    %vm47 = vcmask 7168
    %48 = vst.msk [vmem:[%s2] sm:$0xff] %vm47, %v46
    %v49 = vld [vmem:[%s3] sm:$0xff]
    %v50 = vmul.f32 %v40, %v40
    %v51 = vmul.f32 %v41, %v41
    %v52 = vadd.f32 %v50, %v51
    %53 = vadd.xlane.f32.xlu0 %v52
    %v54 = vpop.xlane.xlu0 %53
    %v55 = vadd.f32 %v49, %v54
    %56 = vst.msk [vmem:[%s3] sm:$0xff] %vm47, %v55
    // Predicated region
    $region18: #{tpu_custom_call.1} parent=1 // pred_check
      _
    $region19: #{tpu_custom_call.1} parent=1 // pred_check_branch
      %58 = sbr.rel (0) target = $region21
    $region20: #{tpu_custom_call.1} parent=1 // pred_region
      _
    $region21: #{tpu_custom_call.1} parent=1 // pred_fallthru
      _
    // Predicated region
    $region22: #{tpu_custom_call.1} parent=1 // pred_check
      _
    $region23: #{tpu_custom_call.1} parent=1 // pred_check_branch
      %60 = sbr.rel (0) target = $region25
    $region24: #{tpu_custom_call.1} parent=1 // pred_region
      _
    $region25: #{tpu_custom_call.1} parent=1 // pred_fallthru
      _
    // Predicated region
    $region26: #{tpu_custom_call.1} parent=1 // pred_check
      _
    $region27: #{tpu_custom_call.1} parent=1 // pred_check_branch
      %62 = sbr.rel (0) target = $region29
    $region28: #{tpu_custom_call.1} parent=1 // pred_region
      _
    $region29: #{tpu_custom_call.1} parent=1 // pred_fallthru
      _
    // Predicated region
    $region30: #{tpu_custom_call.1} parent=1 // pred_check
      _
    $region31: #{tpu_custom_call.1} parent=1 // pred_check_branch
      %64 = sbr.rel (0) target = $region33
    $region32: #{tpu_custom_call.1} parent=1 // pred_region
      _
    $region33: #{tpu_custom_call.1} parent=1 // pred_fallthru
      _
    %65 = vsyncpa [#allocation3], 1

</llo_original>
